<compile_context>
chip_gen: v6e
topology: v6e:2x2x1
jax: 0.10.0
libtpu: 0.0.40
codegen_flags: <defaults>
</compile_context>

<pallas_src>
import functools

import jax
import jax.numpy as jnp
from jax.experimental import pallas as pl
from jax.experimental.pallas import tpu as pltpu


def _basic_block_kernel(p_ref, r_ref, w_ref, bias_ref, o_ref):
    """Fused 3x3 conv (one K=9*Cin matmul) + folded BN + f32 residual + ReLU.

    p_ref:    (1, 9*Cin, H*W)  bf16 im2col patches for one image
                               (rows ordered tap-major: tap*Cin + c)
    r_ref:    (1, Cin, H*W)    f32 residual (x), exact skip-add
    w_ref:    (Cout, 9*Cin)    bf16 conv2 weights with BN scale folded in
    bias_ref: (Cout, 1)        f32 folded BN bias
    o_ref:    (1, Cout, H*W)   f32 output tile (lane-dense, NCHW-ordered)
    """
    # Single MXU pass: (Cout, 9*Cin) @ (9*Cin, M), bf16 operands, f32 acc.
    conv = jnp.dot(w_ref[...], p_ref[0],
                   preferred_element_type=jnp.float32)     # (Cout, M) f32

    y = conv + bias_ref[...] + r_ref[0]                    # bias (Cout,1) bcast
    o_ref[0] = jnp.maximum(y, 0.0).astype(o_ref.dtype)


@functools.partial(jax.jit, static_argnames=("eps",))
def basic_block_forward(x_nchw, conv2_w_oihw, bn2_gamma, bn2_beta,
                        bn2_mean, bn2_var, eps=1e-5):
    """Forward of BasicBlock (with its conv2(x) quirk), NCHW in / NCHW out."""
    N, C, H, W = x_nchw.shape
    Cout = conv2_w_oihw.shape[0]
    assert conv2_w_oihw.shape == (Cout, C, 3, 3)
    assert Cout == C, "residual add requires in_channels == out_channels here"
    M = H * W
    K = 9 * C

    # --- glue: bf16 im2col (wrapper-side), BN folding, weight matrixization --
    x_f32 = x_nchw.astype(jnp.float32)
    residual = x_f32.reshape(N, C, M)                        # f32 skip input

    xb = x_f32.astype(jnp.bfloat16)                          # bf16 conv input
    xp = jnp.pad(xb, ((0, 0), (0, 0), (1, 1), (1, 1)))       # (N, C, H+2, W+2)
    taps = [xp[:, :, dy:dy + H, dx:dx + W].reshape(N, C, M)
            for dy in range(3) for dx in range(3)]
    patches = jnp.concatenate(taps, axis=1)                  # (N, 9*C, M) bf16

    scale = (bn2_gamma / jnp.sqrt(bn2_var + eps)).astype(jnp.float32)  # (Cout,)
    bias = (bn2_beta - bn2_mean * scale).astype(jnp.float32).reshape(Cout, 1)

    # Wmat[o, (dy*3+dx)*C + c] = w[o, c, dy, dx]; fold BN scale per output
    # channel (broadcast along the Cout rows), then cast to bf16.
    wmat = jnp.transpose(conv2_w_oihw.astype(jnp.float32),
                         (0, 2, 3, 1)).reshape(Cout, K)      # (Cout, 9*C)
    wmat = (wmat * scale[:, None]).astype(jnp.bfloat16)      # (Cout, 9*C)

    # --- Pallas call: one image per grid step, lane-dense output ------------
    out = pl.pallas_call(
        _basic_block_kernel,
        out_shape=jax.ShapeDtypeStruct((N, Cout, M), jnp.float32),
        grid_spec=pltpu.PrefetchScalarGridSpec(
            num_scalar_prefetch=0,
            grid=(N,),
            in_specs=[
                pl.BlockSpec((1, K, M), lambda n: (n, 0, 0)),     # patches bf16
                pl.BlockSpec((1, C, M), lambda n: (n, 0, 0)),     # residual f32
                pl.BlockSpec((Cout, K), lambda n: (0, 0)),        # weights bf16
                pl.BlockSpec((Cout, 1), lambda n: (0, 0)),        # bias f32
            ],
            out_specs=pl.BlockSpec((1, Cout, M), lambda n: (n, 0, 0)),
        ),
        compiler_params=pltpu.CompilerParams(
            dimension_semantics=("parallel",)),
    )(patches, residual, wmat, bias)

    # (N, Cout, H*W) is already NCHW-ordered: free reshape, no transpose.
    return out.reshape(N, Cout, H, W)


def _reference_forward(x_nchw, conv2_w, gamma, beta, mean, var, eps=1e-5):
    """Pure-JAX reference replicating the PyTorch forward (eval-mode BN)."""
    conv = jax.lax.conv_general_dilated(
        x_nchw.astype(jnp.float32), conv2_w.astype(jnp.float32),
        window_strides=(1, 1), padding="SAME",
        dimension_numbers=("NCHW", "OIHW", "NCHW"))
    scale = gamma / jnp.sqrt(var + eps)
    bias = beta - mean * scale
    out = conv * scale[None, :, None, None] + bias[None, :, None, None]
    out = out + x_nchw.astype(jnp.float32)  # identity (downsample=None)
    return jnp.maximum(out, 0.0)


if __name__ == "__main__":
    key = jax.random.PRNGKey(0)
    N, C, H, W = 2, 8, 16, 16          # in_channels == out_channels, stride=1
    k = iter(jax.random.split(key, 12))

    x = jax.random.normal(next(k), (N, C, H, W), dtype=jnp.float32)

    # conv1 / bn1 parameters: initialized for fidelity, unused (dead branch).
    conv1_w = jax.random.normal(next(k), (C, C, 3, 3), jnp.float32) * 0.1
    bn1_gamma = jnp.ones((C,), jnp.float32)
    bn1_beta = jnp.zeros((C,), jnp.float32)

    # conv2 / bn2 parameters (the ones that drive the output).
    conv2_w = jax.random.normal(next(k), (C, C, 3, 3), jnp.float32) * 0.1
    bn2_gamma = 1.0 + 0.1 * jax.random.normal(next(k), (C,), jnp.float32)
    bn2_beta = 0.1 * jax.random.normal(next(k), (C,), jnp.float32)
    bn2_mean = 0.1 * jax.random.normal(next(k), (C,), jnp.float32)
    bn2_var = jnp.abs(jax.random.normal(next(k), (C,), jnp.float32)) + 0.5

    out = basic_block_forward(x, conv2_w, bn2_gamma, bn2_beta,
                              bn2_mean, bn2_var)
    out = jax.block_until_ready(out)

    ref = _reference_forward(x, conv2_w, bn2_gamma, bn2_beta,
                             bn2_mean, bn2_var)
    assert out.shape == (N, C, H, W)
    # bf16 MXU operands (f32 accumulation, exact f32 skip-add): loosened tol.
    max_err = float(jnp.max(jnp.abs(out - ref)))
    assert jnp.allclose(out, ref, atol=5e-2, rtol=5e-2), max_err

    print("KERNEL_OK")
</pallas_src>

<mosaic_0001>
module attributes {stable_mosaic.version = 11 : i64} {
  func.func @_basic_block_kernel(%arg0: i32, %arg1: memref<1x72x256xbf16, #tpu.memory_space<vmem>>, %arg2: memref<1x8x256xf32, #tpu.memory_space<vmem>>, %arg3: memref<8x72xbf16, #tpu.memory_space<vmem>>, %arg4: memref<8x1xf32, #tpu.memory_space<vmem>>, %arg5: memref<1x8x256xf32, #tpu.memory_space<vmem>>) attributes {dimension_semantics = [#tpu.dimension_semantics<parallel>], iteration_bounds = array<i64: 2>, scalar_prefetch = 0 : i64, scratch_operands = 0 : i64, tpu.core_type = #tpu.core_type<tc>, window_params = [{transform_indices = @transform_0, window_bounds = array<i64: 1, 72, 256>}, {transform_indices = @transform_1, window_bounds = array<i64: 1, 8, 256>}, {pipeline_mode = #tpu.pipeline_mode<synchronous>, transform_indices = @transform_2, window_bounds = array<i64: 8, 72>}, {pipeline_mode = #tpu.pipeline_mode<synchronous>, transform_indices = @transform_3, window_bounds = array<i64: 8, 1>}, {transform_indices = @transform_4, window_bounds = array<i64: 1, 8, 256>}]} {
    %c0 = arith.constant 0 : index
    %c0_0 = arith.constant 0 : index
    %0 = vector.load %arg3[%c0, %c0_0] : memref<8x72xbf16, #tpu.memory_space<vmem>>, vector<8x72xbf16>
    %c0_1 = arith.constant 0 : index
    %c0_2 = arith.constant 0 : index
    %c0_3 = arith.constant 0 : index
    %1 = vector.load %arg1[%c0_1, %c0_2, %c0_3] : memref<1x72x256xbf16, #tpu.memory_space<vmem>>, vector<1x72x256xbf16>
    %2 = vector.shape_cast %1 : vector<1x72x256xbf16> to vector<72x256xbf16>
    %cst = arith.constant dense<0.000000e+00> : vector<8x256xf32>
    %3 = tpu.matmul %0, %2, %cst {dimension_numbers = #tpu.dot_dimension_numbers<[1], [0], [0], [1], [0, 0, 1, 1], [], []>} : vector<8x72xbf16>, vector<72x256xbf16>, vector<8x256xf32> -> vector<8x256xf32>
    %c0_4 = arith.constant 0 : index
    %c0_5 = arith.constant 0 : index
    %4 = vector.load %arg4[%c0_4, %c0_5] : memref<8x1xf32, #tpu.memory_space<vmem>>, vector<8x1xf32>
    %5 = vector.broadcast %4 : vector<8x1xf32> to vector<8x256xf32>
    %6 = arith.addf %3, %5 : vector<8x256xf32>
    %c0_6 = arith.constant 0 : index
    %c0_7 = arith.constant 0 : index
    %c0_8 = arith.constant 0 : index
    %7 = vector.load %arg2[%c0_6, %c0_7, %c0_8] : memref<1x8x256xf32, #tpu.memory_space<vmem>>, vector<1x8x256xf32>
    %8 = vector.shape_cast %7 : vector<1x8x256xf32> to vector<8x256xf32>
    %9 = arith.addf %6, %8 : vector<8x256xf32>
    %cst_9 = arith.constant 0.000000e+00 : f32
    %10 = vector.broadcast %cst_9 : f32 to vector<8x256xf32>
    %11 = arith.maximumf %9, %10 : vector<8x256xf32>
    %c0_10 = arith.constant 0 : index
    %c0_11 = arith.constant 0 : index
    %c0_12 = arith.constant 0 : index
    %12 = vector.load %arg5[%c0_10, %c0_11, %c0_12] : memref<1x8x256xf32, #tpu.memory_space<vmem>>, vector<1x8x256xf32>
    %13 = vector.shape_cast %12 : vector<1x8x256xf32> to vector<8x256xf32>
    %14 = vector.shape_cast %11 : vector<8x256xf32> to vector<1x8x256xf32>
    tpu.vector_store %arg5[%c0_10, %c0_11, %c0_12], %14 {strides = array<i32>} : memref<1x8x256xf32, #tpu.memory_space<vmem>>, vector<1x8x256xf32>,
    return
  }
  func.func @transform_0(%arg0: i32) -> (i32, i32, i32) {
    %c0_i32 = arith.constant 0 : i32
    %c0_i32_0 = arith.constant 0 : i32
    %c0_i32_1 = arith.constant 0 : i32
    return %arg0, %c0_i32, %c0_i32_0 : i32, i32, i32
  }
  func.func @transform_1(%arg0: i32) -> (i32, i32, i32) {
    %c0_i32 = arith.constant 0 : i32
    %c0_i32_0 = arith.constant 0 : i32
    %c0_i32_1 = arith.constant 0 : i32
    return %arg0, %c0_i32, %c0_i32_0 : i32, i32, i32
  }
  func.func @transform_2(%arg0: i32) -> (i32, i32) {
    %c0_i32 = arith.constant 0 : i32
    %c0_i32_0 = arith.constant 0 : i32
    %c0_i32_1 = arith.constant 0 : i32
    return %c0_i32, %c0_i32_0 : i32, i32
  }
  func.func @transform_3(%arg0: i32) -> (i32, i32) {
    %c0_i32 = arith.constant 0 : i32
    %c0_i32_0 = arith.constant 0 : i32
    %c0_i32_1 = arith.constant 0 : i32
    return %c0_i32, %c0_i32_0 : i32, i32
  }
  func.func @transform_4(%arg0: i32) -> (i32, i32, i32) {
    %c0_i32 = arith.constant 0 : i32
    %c0_i32_0 = arith.constant 0 : i32
    %c0_i32_1 = arith.constant 0 : i32
    return %arg0, %c0_i32, %c0_i32_0 : i32, i32, i32
  }
}

</mosaic_0001>

<llo_original>
// kernel: basic_block_forward.1
$region0: #{basic_block_forward.1}
  #allocation0 [shape = 'u32[]', space=smem, size = 0x4, offset = 0x4, fixed_abs, tag = 'smem constant byte address 0x4 - core index']
  #allocation1 [shape = 'u32[144,128]{1,0:T(1,128)}', space=vmem, size = 0x12000, scoped, tag = 'internal scratch']
  %s0 = inlined_call_operand.vmem [shape: bf16[2,72,256], index: 0, kind: input, shape index: {}]
  %s1 = inlined_call_operand.vmem [shape: f32[2,8,256], index: 1, kind: input, shape index: {}]
  %s2 = inlined_call_operand.vmem [shape: bf16[8,72], index: 2, kind: input, shape index: {}]
  %s3 = inlined_call_operand.vmem [shape: f32[8,1], index: 3, kind: input, shape index: {}]
  %s4 = inlined_call_operand.vmem [shape: f32[2,8,256], index: 4, kind: output, shape index: {}]
  %s5 = sld [smem:[#allocation0]]
  $region49: #{basic_block_forward.1} parent=0
    _
  %s7 = ssub.s32 1, %s5
  %s8 = scalar_select 0, %s7, %s5
  loop: start=0, step=1, limit=4
  $region2: #{basic_block_forward.1} parent=0 // loop_pre_header
    _
  $region3: #{basic_block_forward.1} parent=0 // loop_header
    %s10 = sphi 0, %s14
    %p11 = scmp.ge.s32.totalorder %s10, 4
    %s20 = sphi 0, %s22
    %s23 = sphi 0, %s20
    %s24 = sphi 0, %s23
    %s40 = sphi 0, %s24
    %s46 = sphi 0, %s48
    %s49 = sphi 0, %s46
    %s50 = sphi 0, %s49
    %s66 = sphi 0, %s50
    %s70 = sphi 0, %s70
    %s72 = sphi 0, %s70
    %s73 = sphi 0, %s72
    %s87 = sphi 0, %s73
    %s91 = sphi 0, %s91
    %s93 = sphi 0, %s91
    %s94 = sphi 0, %s93
    %s108 = sphi 0, %s94
    %s114 = sphi 0, %s116
    %s117 = sphi 0, %s114
    %s118 = sphi 0, %s117
    %s134 = sphi 0, %s118
  $region4: #{basic_block_forward.1} parent=0 // loop_header_branch
    %13 = sbr.rel (%p11) target = $region8
  $region5: #{basic_block_forward.1} parent=0 // loop_body
    %s15 = ssub.s32 %s10, 1
    %s16 = ssub.s32 %s10, 2
    %s17 = sadd.s32 %s10, 1
    %s18 = ssub.s32 %s10, %s17
    %p19 = scmp.eq.s32.totalorder %s18, 0
    %s21 = sadd.s32 %s20, 1
    %s22 = scalar_select %p19, %s20, %s21
    %p25 = pneg %p19
    %p26 = scmp.eq.s32.totalorder %s10, 1
    %p27 = por %p25, %p26
    %p28 = scmp.ne.s32.totalorder %s20, %s23
    %p29 = scmp.eq.s32.totalorder %s10, 0
    %p30 = por %p28, %p29
    %p31 = scmp.ne.s32.totalorder %s20, %s23
    %p32 = scmp.eq.s32.totalorder %s15, 1
    %p33 = por %p31, %p32
    %p34 = scmp.ne.s32.totalorder %s23, %s24
    %p35 = scmp.eq.s32.totalorder %s15, 0
    %p36 = por %p34, %p35
    %p37 = scmp.ne.s32.totalorder %s23, %s24
    %p38 = scmp.eq.s32.totalorder %s16, 1
    %p39 = por %p37, %p38
    %p41 = scmp.ne.s32.totalorder %s24, %s40
    %p42 = scmp.eq.s32.totalorder %s16, 0
    %p43 = por %p41, %p42
    %s44 = ssub.s32 %s10, %s17
    %p45 = scmp.eq.s32.totalorder %s44, 0
    %s47 = sadd.s32 %s46, 1
    %s48 = scalar_select %p45, %s46, %s47
    %p51 = pneg %p45
    %p52 = scmp.eq.s32.totalorder %s10, 1
    %p53 = por %p51, %p52
    %p54 = scmp.ne.s32.totalorder %s46, %s49
    %p55 = scmp.eq.s32.totalorder %s10, 0
    %p56 = por %p54, %p55
    %p57 = scmp.ne.s32.totalorder %s46, %s49
    %p58 = scmp.eq.s32.totalorder %s15, 1
    %p59 = por %p57, %p58
    %p60 = scmp.ne.s32.totalorder %s49, %s50
    %p61 = scmp.eq.s32.totalorder %s15, 0
    %p62 = por %p60, %p61
    %p63 = scmp.ne.s32.totalorder %s49, %s50
    %p64 = scmp.eq.s32.totalorder %s16, 1
    %p65 = por %p63, %p64
    %p67 = scmp.ne.s32.totalorder %s50, %s66
    %p68 = scmp.eq.s32.totalorder %s16, 0
    %p69 = por %p67, %p68
    %s71 = sadd.s32 %s70, 1
    %p74 = scmp.eq.s32.totalorder %s10, 1
    %p75 = scmp.ne.s32.totalorder %s70, %s72
    %p76 = scmp.eq.s32.totalorder %s10, 0
    %p77 = por %p75, %p76
    %p78 = scmp.ne.s32.totalorder %s70, %s72
    %p79 = scmp.eq.s32.totalorder %s15, 1
    %p80 = por %p78, %p79
    %p81 = scmp.ne.s32.totalorder %s72, %s73
    %p82 = scmp.eq.s32.totalorder %s15, 0
    %p83 = por %p81, %p82
    %p84 = scmp.ne.s32.totalorder %s72, %s73
    %p85 = scmp.eq.s32.totalorder %s16, 1
    %p86 = por %p84, %p85
    %p88 = scmp.ne.s32.totalorder %s73, %s87
    %p89 = scmp.eq.s32.totalorder %s16, 0
    %p90 = por %p88, %p89
    %s92 = sadd.s32 %s91, 1
    %p95 = scmp.eq.s32.totalorder %s10, 1
    %p96 = scmp.ne.s32.totalorder %s91, %s93
    %p97 = scmp.eq.s32.totalorder %s10, 0
    %p98 = por %p96, %p97
    %p99 = scmp.ne.s32.totalorder %s91, %s93
    %p100 = scmp.eq.s32.totalorder %s15, 1
    %p101 = por %p99, %p100
    %p102 = scmp.ne.s32.totalorder %s93, %s94
    %p103 = scmp.eq.s32.totalorder %s15, 0
    %p104 = por %p102, %p103
    %p105 = scmp.ne.s32.totalorder %s93, %s94
    %p106 = scmp.eq.s32.totalorder %s16, 1
    %p107 = por %p105, %p106
    %p109 = scmp.ne.s32.totalorder %s94, %s108
    %p110 = scmp.eq.s32.totalorder %s16, 0
    %p111 = por %p109, %p110
    %s112 = ssub.s32 %s10, %s17
    %p113 = scmp.eq.s32.totalorder %s112, 0
    %s115 = sadd.s32 %s114, 1
    %s116 = scalar_select %p113, %s114, %s115
    %p119 = pneg %p113
    %p120 = scmp.eq.s32.totalorder %s10, 1
    %p121 = por %p119, %p120
    %p122 = scmp.ne.s32.totalorder %s114, %s117
    %p123 = scmp.eq.s32.totalorder %s10, 0
    %p124 = por %p122, %p123
    %p125 = scmp.ne.s32.totalorder %s114, %s117
    %p126 = scmp.eq.s32.totalorder %s15, 1
    %p127 = por %p125, %p126
    %p128 = scmp.ne.s32.totalorder %s117, %s118
    %p129 = scmp.eq.s32.totalorder %s15, 0
    %p130 = por %p128, %p129
    %p131 = scmp.ne.s32.totalorder %s117, %s118
    %p132 = scmp.eq.s32.totalorder %s16, 1
    %p133 = por %p131, %p132
    %p135 = scmp.ne.s32.totalorder %s118, %s134
    %p136 = scmp.eq.s32.totalorder %s16, 0
    %p137 = por %p135, %p136
    %p138 = scmp.le.s32.totalorder 1, %s10
    %p139 = scmp.lt.s32.totalorder %s10, 3
    %p140 = pnand %p138, %p139
    %p141 = pneg %p140
    // Predicated region
    $region9: #{basic_block_forward.1} parent=5 // pred_check
      _
    $region10: #{basic_block_forward.1} parent=5 // pred_check_branch
      %143 = sbr.rel (%p140) target = $region12
    $region11: #{basic_block_forward.1} parent=5 // pred_region
      %s144 = ssub.s32 %s10, 1
      // Predicated region
      $region13: #{basic_block_forward.1} parent=11 // pred_check
        %p145 = pneg %p83
      $region14: #{basic_block_forward.1} parent=11 // pred_check_branch
        %147 = sbr.rel (%p145) target = $region16
      $region15: #{basic_block_forward.1} parent=11 // pred_region
        _
      $region16: #{basic_block_forward.1} parent=11 // pred_fallthru
        _
      // Predicated region
      $region17: #{basic_block_forward.1} parent=11 // pred_check
        %p148 = pneg %p104
      $region18: #{basic_block_forward.1} parent=11 // pred_check_branch
        %150 = sbr.rel (%p148) target = $region20
      $region19: #{basic_block_forward.1} parent=11 // pred_region
        _
      $region20: #{basic_block_forward.1} parent=11 // pred_fallthru
        _
    $region12: #{basic_block_forward.1} parent=5 // pred_fallthru
      _
    %p151 = scmp.lt.s32.totalorder %s10, 2
    // Predicated region
    $region21: #{basic_block_forward.1} parent=5 // pred_check
      %p152 = pneg %p151
    $region22: #{basic_block_forward.1} parent=5 // pred_check_branch
      %154 = sbr.rel (%p152) target = $region24
    $region23: #{basic_block_forward.1} parent=5 // pred_region
      // Predicated region
      $region25: #{basic_block_forward.1} parent=23 // pred_check
        %p155 = pneg %p30
      $region26: #{basic_block_forward.1} parent=23 // pred_check_branch
        %157 = sbr.rel (%p155) target = $region28
      $region27: #{basic_block_forward.1} parent=23 // pred_region
        %p158 = scmp.lt.s32.totalorder %s10, 1
        %s159 = scalar_select %p158, %s10, 1
        %s160 = smul.addr %s159, 18
        %s161 = smul.addr %s160, 4
        %s162 = scalar_lea.vmem %s0, %s161
      $region28: #{basic_block_forward.1} parent=23 // pred_fallthru
        _
      // Predicated region
      $region29: #{basic_block_forward.1} parent=23 // pred_check
        %p163 = pneg %p56
      $region30: #{basic_block_forward.1} parent=23 // pred_check_branch
        %165 = sbr.rel (%p163) target = $region32
      $region31: #{basic_block_forward.1} parent=23 // pred_region
        %p166 = scmp.lt.s32.totalorder %s10, 1
        %s167 = scalar_select %p166, %s10, 1
        %s168 = smul.addr %s167, 2
        %s169 = smul.addr %s168, 8
        %s170 = scalar_lea.vmem %s1, %s169
      $region32: #{basic_block_forward.1} parent=23 // pred_fallthru
        _
    $region24: #{basic_block_forward.1} parent=5 // pred_fallthru
      _
    %p171 = scmp.le.s32.totalorder 1, %s10
    %p172 = scmp.lt.s32.totalorder %s10, 3
    %p173 = pnand %p171, %p172
    %p174 = pneg %p173
    // Predicated region
    $region33: #{basic_block_forward.1} parent=5 // pred_check
      _
    $region34: #{basic_block_forward.1} parent=5 // pred_check_branch
      %176 = sbr.rel (%p173) target = $region36
    $region35: #{basic_block_forward.1} parent=5 // pred_region
      %s177 = ssub.s32 %s10, 1
      %p178 = scmp.lt.s32.totalorder %s15, 1
      %s179 = scalar_select %p178, %s15, 1
      %s180 = smul.addr %s179, 18
      %s181 = smul.addr %s180, 4
      %s182 = scalar_lea.vmem %s0, %s181
      %p183 = pneg %p36
      %p184 = pneg %p33
      %p185 = scmp.lt.s32.totalorder %s15, 1
      %s186 = scalar_select %p185, %s15, 1
      %s187 = smul.addr %s186, 2
      %s188 = smul.addr %s187, 8
      %s189 = scalar_lea.vmem %s1, %s188
      %p190 = pneg %p62
      %p191 = pneg %p59
      %p192 = pneg %p83
      %p193 = pneg %p80
      %p194 = pneg %p104
      %p195 = pneg %p101
      %p196 = pneg %p130
      %p197 = pneg %p127
      %p198 = scmp.lt.s32.totalorder %s15, 1
      %s199 = scalar_select %p198, %s15, 1
      %s200 = smul.addr %s199, 2
      %s201 = smul.addr %s200, 8
      %s202 = scalar_lea.vmem %s4, %s201
      %p203 = scmp.lt.s32.totalorder %s15, 1
      %s204 = scalar_select %p203, %s15, 1
      %s205 = smul.addr %s204, 18
      %s206 = smul.addr %s205, 4
      %s207 = scalar_lea.vmem %s0, %s206
      %p208 = scmp.lt.s32.totalorder %s15, 1
      %s209 = scalar_select %p208, %s15, 1
      %s210 = smul.addr %s209, 2
      %s211 = smul.addr %s210, 8
      %s212 = scalar_lea.vmem %s1, %s211
      %p213 = scmp.lt.s32.totalorder %s15, 1
      %s214 = scalar_select %p213, %s15, 1
      %s215 = smul.addr %s214, 2
      %s216 = smul.addr %s215, 8
      %s217 = scalar_lea.vmem %s4, %s216
      %v219 = vld [vmem:[%s2] sm:$0xf]
      %v220 = vld [vmem:[%s207] sm:$0xff]
      %v221 = vld [vmem:[%s207 + $0x8] sm:$0xff]
      %v222 = vld [vmem:[%s207 + $0x10] sm:$0xff]
      %v223 = vld [vmem:[%s207 + $0x18] sm:$0xff]
      %v224 = vld [vmem:[%s207 + $0x20] sm:$0xff]
      %v225 = vld [vmem:[%s207 + $0x28] sm:$0xff]
      %v226 = vld [vmem:[%s207 + $0x30] sm:$0xff]
      %v227 = vld [vmem:[%s207 + $0x38] sm:$0xff]
      %v228 = vld [vmem:[%s207 + $0x40] sm:$0xff]
      %v229 = vld [vmem:[%s3] sm:$0xff]
      %231 = vset.pattern.permute.xlu0 0
      %232 = vperm.xlu0 %231, %v229
      %v233 = vpop.permute.xlu0 %232
      %v244 = vunpack.c.l.b16 %v220
      %v245 = vunpack.c.h.b16 %v220
      %v246 = vunpack.c.l.b16 %v221
      %v247 = vunpack.c.h.b16 %v221
      %v248 = vunpack.c.l.b16 %v222
      %v249 = vunpack.c.h.b16 %v222
      %v250 = vunpack.c.l.b16 %v223
      %v251 = vunpack.c.h.b16 %v223
      %v252 = vunpack.c.l.b16 %v224
      %v253 = vunpack.c.h.b16 %v224
      %v254 = vunpack.c.l.b16 %v225
      %v255 = vunpack.c.h.b16 %v225
      %v256 = vunpack.c.l.b16 %v226
      %v257 = vunpack.c.h.b16 %v226
      %v258 = vunpack.c.l.b16 %v227
      %v259 = vunpack.c.h.b16 %v227
      %v260 = vunpack.c.l.b16 %v228
      %v261 = vunpack.c.h.b16 %v228
      %v262 = vpack.c.b16 %v246, %v244
      %v263 = vpack.c.b16 %v247, %v245
      %v264 = vpack.c.b16 %v250, %v248
      %v265 = vpack.c.b16 %v251, %v249
      %v266 = vpack.c.b16 %v254, %v252
      %v267 = vpack.c.b16 %v255, %v253
      %v268 = vpack.c.b16 %v258, %v256
      %v269 = vpack.c.b16 %v259, %v257
      %v270 = vpack.c.b16 %v260, %v260
      %v271 = vpack.c.b16 %v261, %v261
      %vm280 = vcmask 588800
      %v282 = vsel %vm280, %v219, 0
      %vm284 = vcmask 1043456
      %v286 = vsel %vm284, %v270, 0
      %v289 = vsel %vm284, %v271, 0
      %291 = vmatprep.subr.bf16.mxu0 0
      %292 = vmatpush1.bf16.msra.mxu0 0
      %293 = vmatprep.subr.bf16.mxu0 0
      %294 = vmatpush1.bf16.msra.mxu0 0
      %295 = vmatprep.subr.bf16.mxu0 0
      %296 = vmatpush1.bf16.msra.mxu0 0
      %297 = vmatprep.subr.bf16.mxu0 %v289
      %298 = vmatpush1.bf16.msra.mxu0 %v286
      %299 = vmatprep.subr.bf16.mxu0 %v269
      %300 = vmatpush1.bf16.msra.mxu0 %v268
      %301 = vmatprep.subr.bf16.mxu0 %v267
      %302 = vmatpush1.bf16.msra.mxu0 %v266
      %303 = vmatprep.subr.bf16.mxu0 %v265
      %304 = vmatpush1.bf16.msra.mxu0 %v264
      %305 = vmatprep.subr.bf16.mxu0 %v263
      %306 = vmatpush1.bf16.msra.mxu0 %v262
      %307 = vmatprep.subr.bf16.mxu0 0
      %308 = vmatpush2.bf16.msra.mxu0 0
      %309 = vmatprep.subr.bf16.mxu0 0
      %310 = vmatpush2.bf16.msra.mxu0 0
      %311 = vmatprep.subr.bf16.mxu0 0
      %312 = vmatpush2.bf16.msra.mxu0 0
      %313 = vmatprep.subr.bf16.mxu0 0
      %314 = vmatpush2.bf16.msra.mxu0 0
      %315 = vmatprep.subr.bf16.mxu0 0
      %316 = vmatpush2.bf16.msra.mxu0 0
      %317 = vmatprep.subr.bf16.mxu0 0
      %318 = vmatpush2.bf16.msra.mxu0 0
      %319 = vmatprep.subr.bf16.mxu0 0
      %320 = vmatpush2.bf16.msra.mxu0 0
      %321 = vmatprep.subr.bf16.mxu0 0
      %322 = vmatpush2.bf16.msra.mxu0 0
      %323 = vmatprep.mubr.bf16.mxu0 0
      %324 = vmatmul.mubr.bf16.gmra.mxu0 %v282
      %v325 = vpop.f32.mrf.mxu0
      %v326 = vadd.f32 %v233, %v325
      %v327 = vpop.f32.mrf.mxu0
      %v328 = vadd.f32 %v233, %v327
      %v329 = vpop.f32.mrf.mxu0
      %v330 = vpop.f32.mrf.mxu0
      %331 = vdwg.mxu0
      %v332 = vld [vmem:[%s212] sm:$0xff]
      %v333 = vld [vmem:[%s212 + $0x8] sm:$0xff]
      %v334 = vadd.f32 %v326, %v332
      %v335 = vadd.f32 %v328, %v333
      %v336 = vmax.f32 %v334, 0.0
      %v337 = vmax.f32 %v335, 0.0
      %338 = vst [vmem:[%s217] sm:$0xff] %v336
      %339 = vst [vmem:[%s217 + $0x8] sm:$0xff] %v337
      %p340 = scmp.lt.s32.totalorder %s15, 1
      %s341 = scalar_select %p340, %s15, 1
      %s342 = smul.addr %s341, 2
      %s343 = smul.addr %s342, 8
      %s344 = scalar_lea.vmem %s4, %s343
      // Predicated region
      $region37: #{basic_block_forward.1} parent=35 // pred_check
        %p345 = pneg %p127
      $region38: #{basic_block_forward.1} parent=35 // pred_check_branch
        %347 = sbr.rel (%p345) target = $region40
      $region39: #{basic_block_forward.1} parent=35 // pred_region
        _
      $region40: #{basic_block_forward.1} parent=35 // pred_fallthru
        _
    $region36: #{basic_block_forward.1} parent=5 // pred_fallthru
      _
    %p348 = scmp.le.s32.totalorder 2, %s10
    // Predicated region
    $region41: #{basic_block_forward.1} parent=5 // pred_check
      %p349 = pneg %p348
    $region42: #{basic_block_forward.1} parent=5 // pred_check_branch
      %351 = sbr.rel (%p349) target = $region44
    $region43: #{basic_block_forward.1} parent=5 // pred_region
      %s352 = ssub.s32 %s10, 2
      // Predicated region
      $region45: #{basic_block_forward.1} parent=43 // pred_check
        %p353 = pneg %p133
      $region46: #{basic_block_forward.1} parent=43 // pred_check_branch
        %355 = sbr.rel (%p353) target = $region48
      $region47: #{basic_block_forward.1} parent=43 // pred_region
        %p356 = scmp.lt.s32.totalorder %s16, 1
        %s357 = scalar_select %p356, %s16, 1
        %s358 = smul.addr %s357, 2
        %s359 = smul.addr %s358, 8
        %s360 = scalar_lea.vmem %s4, %s359
      $region48: #{basic_block_forward.1} parent=43 // pred_fallthru
        _
    $region44: #{basic_block_forward.1} parent=5 // pred_fallthru
      _
  $region6: #{basic_block_forward.1} parent=0 // loop_footer
    %s14 = sadd.s32 1, %s10
  $region7: #{basic_block_forward.1} parent=0 // loop_footer_branch
    %9 = sbr.rel target = $region3
  $region8: #{basic_block_forward.1} parent=0 // loop_exit
    _

</llo_original>
